<compile_context>
chip_gen: v7x
topology: tpu7x:2x2x1
jax: 0.10.0
libtpu: 0.0.40
codegen_flags: <defaults>
</compile_context>

<pallas_src>
import functools

import jax
import jax.numpy as jnp
from jax.experimental import pallas as pl
from jax.experimental.pallas import tpu as pltpu


def _cond_norm_kernel(img_ref, mi_ref, out_ref, *, nodata_value):
    x = img_ref[...]                      # (TM, TN) f32
    mi = mi_ref[...]                      # (TM, 2)  f32: [:, 0]=mean, [:, 1]=1/std
    m = mi[:, 0:1]                        # (TM, 1)  broadcast over lanes
    inv = mi[:, 1:2]                      # (TM, 1)
    normalized = (x - m) * inv            # VPU only: sub + mul (no divide)
    # Exact-equality compare on the original f32 input; nodata pixels pass through.
    out_ref[...] = jnp.where(x == jnp.float32(nodata_value), x, normalized)


def _chip_budgets():
    """Pick (target_block_bytes, vmem_limit_bytes) for the local TPU generation."""
    try:
        vmem_phys = pltpu.get_tpu_info().vmem_capacity_bytes
    except Exception:
        vmem_phys = None
    if vmem_phys is not None and vmem_phys <= (64 << 20):
        # v7x-class: 64 MiB physical VMEM, ~3.2 TB/s HBM -> bigger blocks to
        # amortize the ~0.35us per-step cost; 4 x 6 MiB + columns << 48 MiB.
        return 6 << 20, 48 << 20
    # v5e / v6e (128 MiB physical): ~3 MiB blocks already sit at the elementwise
    # roofline plateau; 4 x 3 MiB fits comfortably in an explicit 32 MiB limit.
    return 3 << 20, 32 << 20


def _choose_tiles(R, L, target_block_bytes):
    """Pick a legal (TM, TN) f32 block of ~target size, lane-dense, bounded."""
    bytes_per = 4
    # Largest lane tile such that an 8-row block stays within the byte budget.
    max_tn_8rows = max(128, (target_block_bytes // (8 * bytes_per) // 128) * 128)
    if L <= max_tn_8rows:
        # Full rows fit: take the whole lane extent and grow the row tile.
        tn = L
        tm_budget = target_block_bytes // (tn * bytes_per)   # >= 8 by construction
        tm = R if tm_budget >= R else max(8, (tm_budget // 8) * 8)
    else:
        # Rows too long: 128-multiple lane tile, 8 rows; tail lane block is a
        # masked store (cheap) instead of an unbounded tn = L block.
        tn = max_tn_8rows
        tm = 8
    return min(tm, R), min(tn, L)


def _ensure_two_steps(R, L, tm, tn):
    """Make sure the grid has >= 2 steps so both v7x TensorCores get work."""
    if pl.cdiv(R, tm) * pl.cdiv(L, tn) >= 2:
        return tm, tn
    if R > 8:
        new_tm = max(8, ((R // 2 + 7) // 8) * 8)
        if new_tm < R:
            return new_tm, tn
    if L > 128:
        new_tn = max(128, ((L // 2 + 127) // 128) * 128)
        if new_tn < L:
            return tm, new_tn
    return tm, tn   # tiny array; a single step is fine


def conditional_normalize(img, mask, mean, std, nodata_value, *, donate_img=False):
    """img: (B, C, H, W) float32; mask: any array (passed through).

    Returns (normalized_img, mask), matching the PyTorch module's forward.
    """
    B, C, H, W = img.shape
    R, L = B * C, H * W

    img2 = img.reshape(R, L)

    mean = jnp.asarray(mean, dtype=jnp.float32).reshape(C)
    std = jnp.asarray(std, dtype=jnp.float32).reshape(C)
    # Per-row (row = b*C + c -> channel c) params: column 0 = mean, column 1 = 1/std.
    # NOTE: (x - mean) * (1/std) differs from the PyTorch divide by ~1-2 ulp.
    mean_inv = jnp.stack([jnp.tile(mean, B), jnp.tile(1.0 / std, B)], axis=1)  # (R, 2)

    target_block_bytes, vmem_limit_bytes = _chip_budgets()
    tm, tn = _choose_tiles(R, L, target_block_bytes)
    tm, tn = _ensure_two_steps(R, L, tm, tn)
    grid = (pl.cdiv(R, tm), pl.cdiv(L, tn))

    kernel = functools.partial(_cond_norm_kernel, nodata_value=nodata_value)

    out2 = pl.pallas_call(
        kernel,
        out_shape=jax.ShapeDtypeStruct((R, L), jnp.float32),
        grid_spec=pl.GridSpec(
            grid=grid,
            in_specs=[
                pl.BlockSpec((tm, tn), lambda i, j: (i, j)),   # img
                pl.BlockSpec((tm, 2), lambda i, j: (i, 0)),    # [mean, 1/std] per row
            ],
            out_specs=pl.BlockSpec((tm, tn), lambda i, j: (i, j)),
        ),
        compiler_params=pltpu.CompilerParams(
            dimension_semantics=("parallel", "parallel"),
            vmem_limit_bytes=vmem_limit_bytes,
        ),
        cost_estimate=pl.CostEstimate(
            flops=3 * R * L,
            transcendentals=0,
            bytes_accessed=2 * R * L * 4 + R * 2 * 4,
        ),
        # Optional in-place update when the caller no longer needs the input.
        input_output_aliases=({0: 0} if donate_img else {}),
    )(img2, mean_inv)

    return out2.reshape(B, C, H, W), mask


if __name__ == "__main__":
    key = jax.random.PRNGKey(0)
    B, C, H, W = 2, 4, 16, 16
    NODATA = -9999.0

    k_img, k_mask, k_nd = jax.random.split(key, 3)
    img = jax.random.uniform(k_img, (B, C, H, W), dtype=jnp.float32) * 10.0
    # Sprinkle some nodata pixels deterministically.
    nd_mask = jax.random.bernoulli(k_nd, p=0.1, shape=(B, C, H, W))
    img = jnp.where(nd_mask, jnp.float32(NODATA), img)

    mask = jax.random.randint(k_mask, (B, 1, H, W), 0, 5, dtype=jnp.int32)

    # Deterministic per-channel normalization parameters.
    mean = [1.0, 2.0, 3.0, 4.0]
    std = [0.5, 1.0, 1.5, 2.0]

    out_img, out_mask = conditional_normalize(img, mask, mean, std, NODATA)
    jax.block_until_ready(out_img)
    jax.block_until_ready(out_mask)

    # Reference check in plain JAX.
    mean_a = jnp.asarray(mean, jnp.float32).reshape(1, C, 1, 1)
    std_a = jnp.asarray(std, jnp.float32).reshape(1, C, 1, 1)
    ref = (img - mean_a) / std_a
    ref = jnp.where(img == NODATA, img, ref)
    assert jnp.allclose(out_img, ref, rtol=1e-5, atol=1e-6), "mismatch vs reference"
    assert (out_mask == mask).all(), "mask must pass through unchanged"

    print("KERNEL_OK")
</pallas_src>

<mosaic_0001>
module attributes {stable_mosaic.version = 11 : i64} {
  func.func @_cond_norm_kernel(%arg0: i32, %arg1: i32, %arg2: memref<8x128xf32, #tpu.memory_space<vmem>>, %arg3: memref<8x2xf32, #tpu.memory_space<vmem>>, %arg4: memref<8x128xf32, #tpu.memory_space<vmem>>) attributes {dimension_semantics = [#tpu.dimension_semantics<parallel>, #tpu.dimension_semantics<parallel>], iteration_bounds = array<i64: 1, 2>, scalar_prefetch = 0 : i64, scratch_operands = 0 : i64, tpu.core_type = #tpu.core_type<tc>, window_params = [{transform_indices = @transform_0, window_bounds = array<i64: 8, 128>}, {transform_indices = @transform_1, window_bounds = array<i64: 8, 2>}, {transform_indices = @transform_2, window_bounds = array<i64: 8, 128>}]} {
    %c0 = arith.constant 0 : index
    %c0_0 = arith.constant 0 : index
    %0 = vector.load %arg2[%c0, %c0_0] : memref<8x128xf32, #tpu.memory_space<vmem>>, vector<8x128xf32>
    %c0_1 = arith.constant 0 : index
    %c0_2 = arith.constant 0 : index
    %1 = vector.load %arg3[%c0_1, %c0_2] : memref<8x2xf32, #tpu.memory_space<vmem>>, vector<8x2xf32>
    %2 = vector.extract_strided_slice %1 {offsets = [0, 0], sizes = [8, 1], strides = [1, 1]} : vector<8x2xf32> to vector<8x1xf32>
    %3 = vector.extract_strided_slice %1 {offsets = [0, 1], sizes = [8, 1], strides = [1, 1]} : vector<8x2xf32> to vector<8x1xf32>
    %4 = vector.broadcast %2 : vector<8x1xf32> to vector<8x128xf32>
    %5 = arith.subf %0, %4 : vector<8x128xf32>
    %6 = vector.broadcast %3 : vector<8x1xf32> to vector<8x128xf32>
    %7 = arith.mulf %5, %6 : vector<8x128xf32>
    %cst = arith.constant -9.999000e+03 : f32
    %8 = vector.broadcast %cst : f32 to vector<8x128xf32>
    %9 = arith.cmpf oeq, %0, %8 : vector<8x128xf32>
    %10 = arith.select %9, %0, %7 : vector<8x128xi1>, vector<8x128xf32>
    %c0_3 = arith.constant 0 : index
    %c0_4 = arith.constant 0 : index
    %11 = vector.load %arg4[%c0_3, %c0_4] : memref<8x128xf32, #tpu.memory_space<vmem>>, vector<8x128xf32>
    tpu.vector_store %arg4[%c0_3, %c0_4], %10 {strides = array<i32>} : memref<8x128xf32, #tpu.memory_space<vmem>>, vector<8x128xf32>,
    return
  }
  func.func @transform_0(%arg0: i32, %arg1: i32) -> (i32, i32) {
    %c0_i32 = arith.constant 0 : i32
    return %arg0, %arg1 : i32, i32
  }
  func.func @transform_1(%arg0: i32, %arg1: i32) -> (i32, i32) {
    %c0_i32 = arith.constant 0 : i32
    %c0_i32_0 = arith.constant 0 : i32
    return %arg0, %c0_i32 : i32, i32
  }
  func.func @transform_2(%arg0: i32, %arg1: i32) -> (i32, i32) {
    %c0_i32 = arith.constant 0 : i32
    return %arg0, %arg1 : i32, i32
  }
}

</mosaic_0001>

<llo_original>
// kernel: tpu_custom_call.1
$region0: #{tpu_custom_call.1}
  #allocation0 [shape = 'u32[]', space=smem, size = 0x4, offset = 0x4, fixed_abs, tag = 'smem constant byte address 0x4 - core index']
  #allocation1 [shape = 'u32[144,128]{1,0:T(1,128)}', space=vmem, size = 0x12000, scoped, tag = 'internal scratch']
  %s0 = inlined_call_operand.hbm [shape: f32[8,256], index: 0, kind: input, shape index: {}]
  %s1 = inlined_call_operand.vmem [shape: f32[8,2], index: 1, kind: input, shape index: {}]
  %s2 = inlined_call_operand.hbm [shape: f32[8,256], index: 2, kind: output, shape index: {}]
  %s3 = sld [smem:[#allocation0]]
  $region45: #{tpu_custom_call.1} parent=0
    _
  %s5 = ssub.s32 1, %s3
  %s6 = scalar_select 0, %s5, %s3
  $region1: #{tpu_custom_call.1} parent=0
    #allocation2 [shape = 'u8[8192]{0}', space=vmem, size = 0x2000, scoped, tag = 'input window, operand 0']
    #allocation3 [shape = 's32[2]{0}', space=sflag, size = 0x8, scoped, tag = 'scoped memory for tpu_custom_call.1']
    #allocation4 [shape = 's32[2]{0}', space=sflag, size = 0x8, scoped, tag = 'scoped memory for tpu_custom_call.1']
    #allocation5 [shape = 'u8[8192]{0}', space=vmem, size = 0x2000, scoped, tag = 'output window, operand 0']
    %7 = vsyncpa [#allocation3], 0
    %s8 = scalar_lea.sflag [#allocation3], 1
    %9 = vsyncpa %s8, 0
    %10 = vsyncpa [#allocation4], 0
    %s11 = scalar_lea.sflag [#allocation4], 1
    %12 = vsyncpa %s11, 0
    loop: start=0, step=1, limit=4
    $region2: #{tpu_custom_call.1} parent=1 // loop_pre_header
      _
    $region3: #{tpu_custom_call.1} parent=1 // loop_header
      %s14 = sphi 0, %s18
      %p15 = scmp.ge.s32.totalorder %s14, 4
      %s21 = sphi 0, %s33
      %s22 = sphi 0, %s29
      %s23 = sphi 0, %s21
      %s24 = sphi 0, %s22
      %s25 = sphi 0, %s23
      %s26 = sphi 0, %s24
      %s38 = sphi 0, %s40
      %s41 = sphi 0, %s38
      %s42 = sphi 0, %s41
      %s58 = sphi 0, %s42
      %s64 = sphi 0, %s66
      %s67 = sphi 0, %s64
      %s68 = sphi 0, %s67
      %s84 = sphi 0, %s68
      %s92 = sphi 0, %s94
      %s95 = sphi 0, %s92
      %s96 = sphi 0, %s95
      %s112 = sphi 0, %s96
    $region4: #{tpu_custom_call.1} parent=1 // loop_header_branch
      %17 = sbr.rel (%p15) target = $region8
    $region5: #{tpu_custom_call.1} parent=1 // loop_body
      %s19 = ssub.s32 %s14, 1
      %s20 = ssub.s32 %s14, 2
      %s27 = sadd.s32 1, %s22
      %p28 = scmp.ge.s32.totalorder %s27, 2
      %s29 = scalar_select %p28, 0, %s27
      %s30 = sadd.s32 1, %s21
      %s31 = scalar_select %p28, %s30, %s21
      %p32 = scmp.ge.s32.totalorder %s31, 1
      %s33 = scalar_select %p32, 0, %s31
      %s34 = ssub.s32 %s21, %s33
      %s35 = ssub.s32 %s22, %s29
      %s36 = sor.u32 %s34, %s35
      %p37 = scmp.eq.s32.totalorder %s36, 0
      %s39 = sadd.s32 %s38, 1
      %s40 = scalar_select %p37, %s38, %s39
      %p43 = pneg %p37
      %p44 = scmp.eq.s32.totalorder %s14, 1
      %p45 = por %p43, %p44
      %p46 = scmp.ne.s32.totalorder %s38, %s41
      %p47 = scmp.eq.s32.totalorder %s14, 0
      %p48 = por %p46, %p47
      %p49 = scmp.ne.s32.totalorder %s38, %s41
      %p50 = scmp.eq.s32.totalorder %s19, 1
      %p51 = por %p49, %p50
      %p52 = scmp.ne.s32.totalorder %s41, %s42
      %p53 = scmp.eq.s32.totalorder %s19, 0
      %p54 = por %p52, %p53
      %p55 = scmp.ne.s32.totalorder %s41, %s42
      %p56 = scmp.eq.s32.totalorder %s20, 1
      %p57 = por %p55, %p56
      %p59 = scmp.ne.s32.totalorder %s42, %s58
      %p60 = scmp.eq.s32.totalorder %s20, 0
      %p61 = por %p59, %p60
      %s62 = ssub.s32 %s21, %s33
      %p63 = scmp.eq.s32.totalorder %s62, 0
      %s65 = sadd.s32 %s64, 1
      %s66 = scalar_select %p63, %s64, %s65
      %p69 = pneg %p63
      %p70 = scmp.eq.s32.totalorder %s14, 1
      %p71 = por %p69, %p70
      %p72 = scmp.ne.s32.totalorder %s64, %s67
      %p73 = scmp.eq.s32.totalorder %s14, 0
      %p74 = por %p72, %p73
      %p75 = scmp.ne.s32.totalorder %s64, %s67
      %p76 = scmp.eq.s32.totalorder %s19, 1
      %p77 = por %p75, %p76
      %p78 = scmp.ne.s32.totalorder %s67, %s68
      %p79 = scmp.eq.s32.totalorder %s19, 0
      %p80 = por %p78, %p79
      %p81 = scmp.ne.s32.totalorder %s67, %s68
      %p82 = scmp.eq.s32.totalorder %s20, 1
      %p83 = por %p81, %p82
      %p85 = scmp.ne.s32.totalorder %s68, %s84
      %p86 = scmp.eq.s32.totalorder %s20, 0
      %p87 = por %p85, %p86
      %s88 = ssub.s32 %s21, %s33
      %s89 = ssub.s32 %s22, %s29
      %s90 = sor.u32 %s88, %s89
      %p91 = scmp.eq.s32.totalorder %s90, 0
      %s93 = sadd.s32 %s92, 1
      %s94 = scalar_select %p91, %s92, %s93
      %p97 = pneg %p91
      %p98 = scmp.eq.s32.totalorder %s14, 1
      %p99 = por %p97, %p98
      %p100 = scmp.ne.s32.totalorder %s92, %s95
      %p101 = scmp.eq.s32.totalorder %s14, 0
      %p102 = por %p100, %p101
      %p103 = scmp.ne.s32.totalorder %s92, %s95
      %p104 = scmp.eq.s32.totalorder %s19, 1
      %p105 = por %p103, %p104
      %p106 = scmp.ne.s32.totalorder %s95, %s96
      %p107 = scmp.eq.s32.totalorder %s19, 0
      %p108 = por %p106, %p107
      %p109 = scmp.ne.s32.totalorder %s95, %s96
      %p110 = scmp.eq.s32.totalorder %s20, 1
      %p111 = por %p109, %p110
      %p113 = scmp.ne.s32.totalorder %s96, %s112
      %p114 = scmp.eq.s32.totalorder %s20, 0
      %p115 = por %p113, %p114
      %p116 = scmp.le.s32.totalorder 1, %s14
      %p117 = scmp.lt.s32.totalorder %s14, 3
      %p118 = pnand %p116, %p117
      %p119 = pneg %p118
      // Predicated region
      $region9: #{tpu_custom_call.1} parent=5 // pred_check
        _
      $region10: #{tpu_custom_call.1} parent=5 // pred_check_branch
        %121 = sbr.rel (%p118) target = $region12
      $region11: #{tpu_custom_call.1} parent=5 // pred_region
        %s122 = ssub.s32 %s14, 1
        // Predicated region
        $region13: #{tpu_custom_call.1} parent=11 // pred_check
          %p123 = pneg %p80
        $region14: #{tpu_custom_call.1} parent=11 // pred_check_branch
          %125 = sbr.rel (%p123) target = $region16
        $region15: #{tpu_custom_call.1} parent=11 // pred_region
          %p126 = scmp.lt.s32.totalorder %s23, 0
          %s127 = scalar_select %p126, %s23, 0
          %s128 = smul.addr %s127, 8
          %s129 = scalar_lea.vmem %s1, %s128
        $region16: #{tpu_custom_call.1} parent=11 // pred_fallthru
          _
      $region12: #{tpu_custom_call.1} parent=5 // pred_fallthru
        _
      %p130 = scmp.lt.s32.totalorder %s14, 2
      // Predicated region
      $region17: #{tpu_custom_call.1} parent=5 // pred_check
        %p131 = pneg %p130
      $region18: #{tpu_custom_call.1} parent=5 // pred_check_branch
        %133 = sbr.rel (%p131) target = $region20
      $region19: #{tpu_custom_call.1} parent=5 // pred_region
        // Predicated region
        $region21: #{tpu_custom_call.1} parent=19 // pred_check
          %p134 = pneg %p48
        $region22: #{tpu_custom_call.1} parent=19 // pred_check_branch
          %136 = sbr.rel (%p134) target = $region24
        $region23: #{tpu_custom_call.1} parent=19 // pred_region
          %s137 = sand.u32 %s38, 1
          %s138 = scalar_lea.sflag [#allocation3], %s137
          %s139 = sand.u32 %s38, 1
          %s140 = smul.addr %s139, 8
          %s141 = scalar_lea.vmem [#allocation2], %s140
          %s143 = ssub.s32 128, 128
          %144 = vsyncadd %s138, %s143
          %s145 = smul.addr %s21, 2
          %s146 = sadd.s32 %s22, %s145
          %s147 = smul.addr %s146, 128
          %s148 = scalar_lea.hbm %s0, %s147
          %s150 = sshll.u32 %s141, 4
          %s151 = int_to_ptr.vmem [resolvable:$true] %s150
          %153 = dma.hbm_to_vmem [thread:$0]  %s148, 128, %s151, %s138
        $region24: #{tpu_custom_call.1} parent=19 // pred_fallthru
          _
      $region20: #{tpu_custom_call.1} parent=5 // pred_fallthru
        _
      %p154 = scmp.le.s32.totalorder 1, %s14
      %p155 = scmp.lt.s32.totalorder %s14, 3
      %p156 = pnand %p154, %p155
      %p157 = pneg %p156
      // Predicated region
      $region25: #{tpu_custom_call.1} parent=5 // pred_check
        _
      $region26: #{tpu_custom_call.1} parent=5 // pred_check_branch
        %159 = sbr.rel (%p156) target = $region28
      $region27: #{tpu_custom_call.1} parent=5 // pred_region
        %s160 = ssub.s32 %s14, 1
        %s161 = sand.u32 %s41, 1
        %s162 = scalar_lea.sflag [#allocation3], %s161
        %s163 = sand.u32 %s41, 1
        %s164 = smul.addr %s163, 8
        %s165 = scalar_lea.vmem [#allocation2], %s164
        // Predicated region
        $region29: #{tpu_custom_call.1} parent=27 // pred_check
          %p166 = pneg %p54
        $region30: #{tpu_custom_call.1} parent=27 // pred_check_branch
          %168 = sbr.rel (%p166) target = $region32
        $region31: #{tpu_custom_call.1} parent=27 // pred_region
          %169 = dma.done %s162, 128
        $region32: #{tpu_custom_call.1} parent=27 // pred_fallthru
          _
        %s170 = sand.u32 %s41, 1
        %s171 = scalar_lea.sflag [#allocation3], %s170
        %s172 = sand.u32 %s41, 1
        %s173 = smul.addr %s172, 8
        %s174 = scalar_lea.vmem [#allocation2], %s173
        %p175 = pneg %p54
        %p176 = pneg %p51
        %p177 = scmp.lt.s32.totalorder %s23, 0
        %s178 = scalar_select %p177, %s23, 0
        %s179 = smul.addr %s178, 8
        %s180 = scalar_lea.vmem %s1, %s179
        %p181 = pneg %p80
        %p182 = pneg %p77
        %p183 = pneg %p108
        %p184 = pneg %p105
        %s185 = sand.u32 %s95, 1
        %s186 = scalar_lea.sflag [#allocation4], %s185
        %s187 = sand.u32 %s95, 1
        %s188 = smul.addr %s187, 8
        %s189 = scalar_lea.vmem [#allocation5], %s188
        %p190 = scmp.lt.s32.totalorder %s23, 0
        %s191 = scalar_select %p190, %s23, 0
        %s192 = smul.addr %s191, 8
        %s193 = scalar_lea.vmem %s1, %s192
        %v194 = vld [vmem:[%s165] sm:$0xff]
        %v195 = vld [vmem:[%s193] sm:$0xff]
        %197 = vset.pattern.permute.xlu0 0
        %198 = vperm.xlu0 %197, %v195
        %v199 = vpop.permute.xlu0 %198
        %v201 = vsub.f32 %v194, %v199
        %202 = vset.pattern.permute.xlu0 1
        %203 = vperm.xlu0 %202, %v195
        %v204 = vpop.permute.xlu0 %203
        %v206 = vmul.f32 %v201, %v204
        %vm207 = vcmp.eq.f32.partialorder %v194, -9999.0
        %v208 = vsel %vm207, %v194, %v206
        %209 = vst [vmem:[%s189] sm:$0xff] %v208
        %s210 = sand.u32 %s95, 1
        %s211 = scalar_lea.sflag [#allocation4], %s210
        %s212 = sand.u32 %s95, 1
        %s213 = smul.addr %s212, 8
        %s214 = scalar_lea.vmem [#allocation5], %s213
        // Predicated region
        $region33: #{tpu_custom_call.1} parent=27 // pred_check
          %p215 = pneg %p105
        $region34: #{tpu_custom_call.1} parent=27 // pred_check_branch
          %217 = sbr.rel (%p215) target = $region36
        $region35: #{tpu_custom_call.1} parent=27 // pred_region
          %s219 = ssub.s32 128, 128
          %220 = vsyncadd %s211, %s219
          %s221 = smul.addr %s23, 2
          %s222 = sadd.s32 %s24, %s221
          %s223 = smul.addr %s222, 128
          %s224 = scalar_lea.hbm %s2, %s223
          %s226 = sshll.u32 %s214, 4
          %s227 = int_to_ptr.vmem [resolvable:$true] %s226
          %229 = dma.vmem_to_hbm [thread:$0]  %s227, 128, %s224, %s211
        $region36: #{tpu_custom_call.1} parent=27 // pred_fallthru
          _
      $region28: #{tpu_custom_call.1} parent=5 // pred_fallthru
        _
      %p230 = scmp.le.s32.totalorder 2, %s14
      // Predicated region
      $region37: #{tpu_custom_call.1} parent=5 // pred_check
        %p231 = pneg %p230
      $region38: #{tpu_custom_call.1} parent=5 // pred_check_branch
        %233 = sbr.rel (%p231) target = $region40
      $region39: #{tpu_custom_call.1} parent=5 // pred_region
        %s234 = ssub.s32 %s14, 2
        // Predicated region
        $region41: #{tpu_custom_call.1} parent=39 // pred_check
          %p235 = pneg %p111
        $region42: #{tpu_custom_call.1} parent=39 // pred_check_branch
          %237 = sbr.rel (%p235) target = $region44
        $region43: #{tpu_custom_call.1} parent=39 // pred_region
          %s238 = sand.u32 %s96, 1
          %s239 = scalar_lea.sflag [#allocation4], %s238
          %s240 = sand.u32 %s96, 1
          %s241 = smul.addr %s240, 8
          %s242 = scalar_lea.vmem [#allocation5], %s241
          %243 = dma.done %s239, 128
        $region44: #{tpu_custom_call.1} parent=39 // pred_fallthru
          _
      $region40: #{tpu_custom_call.1} parent=5 // pred_fallthru
        _
    $region6: #{tpu_custom_call.1} parent=1 // loop_footer
      %s18 = sadd.s32 1, %s14
    $region7: #{tpu_custom_call.1} parent=1 // loop_footer_branch
      %13 = sbr.rel target = $region3
    $region8: #{tpu_custom_call.1} parent=1 // loop_exit
      _
    %244 = vsyncpa [#allocation3], 1
    %s245 = scalar_lea.sflag [#allocation3], 1
    %246 = vsyncpa %s245, 1
    %247 = vsyncpa [#allocation4], 1
    %s248 = scalar_lea.sflag [#allocation4], 1
    %249 = vsyncpa %s248, 1

</llo_original>
